<compile_context>
chip_gen: v6e
topology: v6e:2x2x1
jax: 0.10.0
libtpu: 0.0.40
codegen_flags: <defaults>
</compile_context>

<pallas_src>
import functools

import numpy as np
import jax
import jax.numpy as jnp
from jax import lax
from jax.experimental import pallas as pl
from jax.experimental.pallas import tpu as pltpu

_LANES = 128


def _probe_pack_order():
    """True if lax.bitcast_convert_type puts element 0 in the LOW 16 bits."""
    try:
        v = lax.bitcast_convert_type(jnp.array([1, 0], dtype=jnp.uint16),
                                     jnp.uint32)
        return bool(int(jax.device_get(v)) == 1)
    except Exception:
        return True


_LO_IS_FIRST = _probe_pack_order()   # evaluated once, stays a Python constant


def _auto_config():
    """(tile_rows, vmem_limit_bytes), generation aware with a safe fallback."""
    try:
        vmem = pltpu.get_tpu_info().vmem_capacity_bytes
    except Exception:
        vmem = 64 * 1024 * 1024
    if vmem >= 100 * 1024 * 1024:          # v5e / v6e: 128 MiB physical VMEM
        return 16384, 64 * 1024 * 1024
    return 8192, 32 * 1024 * 1024          # v7x: 64 MiB per TensorCore


def _miou_kernel(x_ref, t_ref, m_ref, inter_ref, union_ref, *,
                 rows_valid, tile_rows, ragged_rows, packed, class0_low):
    s = pl.program_id(1)

    @pl.when(s == 0)
    def _():
        inter_ref[...] = jnp.zeros_like(inter_ref)
        union_ref[...] = jnp.zeros_like(union_ref)

    if packed:
        # (tile_rows, 128) uint32, each lane = (class0, class1) bf16 pair.
        w = x_ref[0]
        lo = pltpu.bitcast(w << 16, jnp.float32)                    # low 16 bits
        hi = pltpu.bitcast(w & jnp.uint32(0xFFFF0000), jnp.float32) # high 16 bits
        d = (hi - lo) if class0_low else (lo - hi)                  # x1 - x0
    else:
        d = x_ref[0].astype(jnp.float32)    # precomputed x1 - x0, (tile_rows, 128)

    t = t_ref[0].astype(jnp.float32)        # narrow dtypes cast in-register
    m = m_ref[0].astype(jnp.float32)

    # softmax over two classes == sigmoid(x1 - x0); tanh form keeps the divide
    # off the VALU (single EUP push + 3 cheap VPU ops).
    p = 0.5 * jnp.tanh(0.5 * d) + 0.5

    p_fg = p * m
    # one-hot (class 1) of (target*mask).long(), matching torch's truncation.
    t_fg = ((t * m).astype(jnp.int32) == 1).astype(jnp.float32)

    prod = p_fg * t_fg
    uni = p_fg + t_fg - prod

    if ragged_rows:
        # Only the last row-tile runs past the array; masking prod/uni (two
        # selects) also squashes NaN/Inf arising from garbage padding rows.
        rem = rows_valid - s * tile_rows
        row = lax.broadcasted_iota(jnp.int32, prod.shape, 0)
        keep = row < rem
        prod = jnp.where(keep, prod, 0.0)
        uni = jnp.where(keep, uni, 0.0)

    tr = prod.shape[0]
    if tr % 8 == 0:
        # cheap vreg-wise partial sums into the lane-wide (8,128) accumulator
        inter_ref[0] += jnp.sum(prod.reshape(tr // 8, 8, _LANES), axis=0)
        union_ref[0] += jnp.sum(uni.reshape(tr // 8, 8, _LANES), axis=0)
    else:
        # tiny / odd single-step tile: accumulate into the first row
        inter_ref[0, 0:1, :] += jnp.sum(prod, axis=0, keepdims=True)
        union_ref[0, 0:1, :] += jnp.sum(uni, axis=0, keepdims=True)


def miou_loss(inputs, target, mask, n_classes=2, *, tile_rows=None):
    """Pallas TPU implementation of mIoULoss.forward. Returns (loss, mean_iou)."""
    # TODO(synk): only the binary (n_classes == 2, module default) path is
    # implemented; the general multi-class softmax + one-hot path is not.
    assert n_classes == 2 and inputs.shape[-1] == 2, "only n_classes == 2 supported"

    N = inputs.shape[0]
    S = int(np.prod(inputs.shape[1:-1]))

    x = inputs.reshape(N, S, 2)
    packed = (x.dtype == jnp.bfloat16)
    if packed:
        # Free bitcast: the bf16 logit pair becomes one uint32 lane; the class
        # difference / sigmoid happen in-kernel (no wrapper pass over logits).
        xin = lax.bitcast_convert_type(x, jnp.uint32)               # (N, S) u32
    else:
        if x.dtype != jnp.float32:
            x = x.astype(jnp.float32)
        # TODO(synk): fully fusing the f32 class-diff needs an in-kernel lane
        # de-interleave; f32 callers still pay this one fused XLA pass.
        xin = x[..., 1] - x[..., 0]                                 # (N, S) f32

    def _nm(a):
        a = a.reshape(N, S)
        if a.dtype == jnp.bool_:
            a = a.astype(jnp.int8)        # keep narrow, avoid 1-bit handling
        return a                          # no f32 upcast: cast happens in-kernel

    t = _nm(target)
    m = _nm(mask)

    # Pad the flattened spatial axis to a multiple of 128 lanes only if needed
    # (mask pads with zeros, so padded voxels contribute exactly nothing).
    Sp = ((S + _LANES - 1) // _LANES) * _LANES
    if Sp != S:
        pad = ((0, 0), (0, Sp - S))
        xin, t, m = jnp.pad(xin, pad), jnp.pad(t, pad), jnp.pad(m, pad)

    R = Sp // _LANES                      # dense (rows, 128) spatial layout

    # Split each batch's rows in two when possible: the parallel grid axis gets
    # 2*N entries, keeping both v7x TensorCores busy for any N (no cost on the
    # single-core generations, where the grid is just a sequential loop).
    P = 2 if (R % 2 == 0 and R >= 16) else 1
    NV, Rv = N * P, R // P

    xin = xin.reshape(NV, Rv, _LANES)
    t = t.reshape(NV, Rv, _LANES)
    m = m.reshape(NV, Rv, _LANES)

    if tile_rows is None:
        tile_rows, vmem_limit = _auto_config()
    else:
        vmem_limit = 32 * 1024 * 1024

    if Rv <= tile_rows:
        tr = Rv                                     # one full-extent block
    else:
        tr = max(32, (tile_rows // 32) * 32)        # 32-row multiple: legal for int8 tiles
    steps = pl.cdiv(Rv, tr)
    ragged = (Rv % tr) != 0

    kernel = functools.partial(
        _miou_kernel, rows_valid=Rv, tile_rows=tr, ragged_rows=ragged,
        packed=packed, class0_low=_LO_IS_FIRST)

    inter, union = pl.pallas_call(
        kernel,
        out_shape=(jax.ShapeDtypeStruct((NV, 8, _LANES), jnp.float32),
                   jax.ShapeDtypeStruct((NV, 8, _LANES), jnp.float32)),
        grid_spec=pltpu.PrefetchScalarGridSpec(
            num_scalar_prefetch=0,
            grid=(NV, steps),
            in_specs=[
                pl.BlockSpec((1, tr, _LANES), lambda b, s: (b, s, 0)),
                pl.BlockSpec((1, tr, _LANES), lambda b, s: (b, s, 0)),
                pl.BlockSpec((1, tr, _LANES), lambda b, s: (b, s, 0)),
            ],
            out_specs=[
                pl.BlockSpec((1, 8, _LANES), lambda b, s: (b, 0, 0)),
                pl.BlockSpec((1, 8, _LANES), lambda b, s: (b, 0, 0)),
            ],
        ),
        compiler_params=pltpu.CompilerParams(
            dimension_semantics=("parallel", "arbitrary"),
            vmem_limit_bytes=vmem_limit),
    )(xin, t, m)

    # lane-wide partial sums -> per-batch scalars (tiny epilogue)
    inter = inter.reshape(N, -1).sum(axis=-1)
    union = union.reshape(N, -1).sum(axis=-1)

    iou = inter / (union + 1e-8)
    miou = jnp.mean(iou)
    return 1.0 - miou, miou


def _ref_miou(inputs, target, mask, n_classes=2):
    """Pure-JAX reference mirroring the PyTorch module."""
    N = inputs.shape[0]
    mask = mask.astype(jnp.float32)
    p = jax.nn.softmax(inputs.astype(jnp.float32), axis=-1)
    target_valid = target.astype(jnp.float32) * mask
    inputs_valid = p * mask
    onehot = jax.nn.one_hot(target_valid[..., 0].astype(jnp.int32), n_classes)
    pv = inputs_valid[..., 1:]
    tv = onehot[..., 1:]
    inter = (pv * tv).reshape(N, -1, n_classes - 1).sum(1)
    union = (pv + tv - pv * tv).reshape(N, -1, n_classes - 1).sum(1)
    iou = inter / (union + 1e-8)
    return 1.0 - iou.mean(), iou.mean()


def _check(key, shape, *, dtype=jnp.float32, tm_dtype=jnp.int8,
           tile_rows=None, tol=2e-5):
    k1, k2, k3 = jax.random.split(key, 3)
    inputs = jax.random.normal(k1, shape + (2,), dtype=jnp.float32).astype(dtype)
    target = jax.random.bernoulli(k2, 0.5, shape + (1,)).astype(tm_dtype)
    mask = jax.random.bernoulli(k3, 0.7, shape + (1,)).astype(tm_dtype)

    loss, miou = miou_loss(inputs, target, mask, n_classes=2, tile_rows=tile_rows)
    loss, miou = jax.block_until_ready((loss, miou))

    loss_ref, miou_ref = _ref_miou(inputs, target, mask, 2)
    assert jnp.allclose(loss, loss_ref, atol=tol), (shape, loss, loss_ref)
    assert jnp.allclose(miou, miou_ref, atol=tol), (shape, miou, miou_ref)


if __name__ == "__main__":
    key = jax.random.PRNGKey(0)
    keys = jax.random.split(key, 5)

    # f32 logits + int8 target/mask; odd N exercises the generalized 2-way split
    _check(keys[0], (3, 8, 8, 8, 8))
    # bf16 logits: fully fused packed-u32 path (no wrapper pass over the logits)
    _check(keys[1], (1, 8, 8, 8, 8), dtype=jnp.bfloat16)
    # spatial size not a multiple of 128: lane-pad path, tiny odd tile, f32 t/m
    _check(keys[2], (2, 3, 5, 7, 3), tm_dtype=jnp.float32)
    # bf16 packed path with a multi-step row grid and ragged last tile
    _check(keys[3], (2, 8, 8, 10, 16), dtype=jnp.bfloat16, tile_rows=32)
    # f32 path with a multi-step row grid and ragged last tile
    _check(keys[4], (1, 8, 8, 10, 16), tile_rows=32)

    print("KERNEL_OK")
</pallas_src>

<mosaic_0001>
module attributes {stable_mosaic.version = 11 : i64} {
  func.func @_miou_kernel(%arg0: i32, %arg1: i32, %arg2: memref<1x16x128xf32, #tpu.memory_space<vmem>>, %arg3: memref<1x16x128xi8, #tpu.memory_space<vmem>>, %arg4: memref<1x16x128xi8, #tpu.memory_space<vmem>>, %arg5: memref<1x8x128xf32, #tpu.memory_space<vmem>>, %arg6: memref<1x8x128xf32, #tpu.memory_space<vmem>>) attributes {dimension_semantics = [#tpu.dimension_semantics<parallel>, #tpu.dimension_semantics<arbitrary>], iteration_bounds = array<i64: 6, 1>, scalar_prefetch = 0 : i64, scratch_operands = 0 : i64, tpu.core_type = #tpu.core_type<tc>, window_params = [{transform_indices = @transform_0, window_bounds = array<i64: 1, 16, 128>}, {transform_indices = @transform_1, window_bounds = array<i64: 1, 16, 128>}, {transform_indices = @transform_2, window_bounds = array<i64: 1, 16, 128>}, {transform_indices = @transform_3, window_bounds = array<i64: 1, 8, 128>}, {transform_indices = @transform_4, window_bounds = array<i64: 1, 8, 128>}]} {
    %c0_i32 = arith.constant 0 : i32
    %0 = arith.cmpi eq, %arg1, %c0_i32 : i32
    %1 = arith.extui %0 : i1 to i32
    %c0_i32_0 = arith.constant 0 : i32
    %2 = arith.cmpi ne, %1, %c0_i32_0 : i32
    scf.if %2 {
      %cst_25 = arith.constant 0.000000e+00 : f32
      %44 = vector.broadcast %cst_25 : f32 to vector<1x8x128xf32>
      %c0_26 = arith.constant 0 : index
      %c0_27 = arith.constant 0 : index
      %c0_28 = arith.constant 0 : index
      %45 = vector.load %arg5[%c0_26, %c0_27, %c0_28] : memref<1x8x128xf32, #tpu.memory_space<vmem>>, vector<1x8x128xf32>
      tpu.vector_store %arg5[%c0_26, %c0_27, %c0_28], %44 {strides = array<i32>} : memref<1x8x128xf32, #tpu.memory_space<vmem>>, vector<1x8x128xf32>,
      %cst_29 = arith.constant 0.000000e+00 : f32
      %46 = vector.broadcast %cst_29 : f32 to vector<1x8x128xf32>
      %c0_30 = arith.constant 0 : index
      %c0_31 = arith.constant 0 : index
      %c0_32 = arith.constant 0 : index
      %47 = vector.load %arg6[%c0_30, %c0_31, %c0_32] : memref<1x8x128xf32, #tpu.memory_space<vmem>>, vector<1x8x128xf32>
      tpu.vector_store %arg6[%c0_30, %c0_31, %c0_32], %46 {strides = array<i32>} : memref<1x8x128xf32, #tpu.memory_space<vmem>>, vector<1x8x128xf32>,
    } else {
    }
    %c0 = arith.constant 0 : index
    %c0_1 = arith.constant 0 : index
    %c0_2 = arith.constant 0 : index
    %3 = vector.load %arg2[%c0, %c0_1, %c0_2] : memref<1x16x128xf32, #tpu.memory_space<vmem>>, vector<1x16x128xf32>
    %4 = vector.shape_cast %3 : vector<1x16x128xf32> to vector<16x128xf32>
    %c0_3 = arith.constant 0 : index
    %c0_4 = arith.constant 0 : index
    %c0_5 = arith.constant 0 : index
    %5 = vector.load %arg3[%c0_3, %c0_4, %c0_5] : memref<1x16x128xi8, #tpu.memory_space<vmem>>, vector<1x16x128xi8>
    %6 = vector.shape_cast %5 : vector<1x16x128xi8> to vector<16x128xi8>
    %7 = arith.sitofp %6 : vector<16x128xi8> to vector<16x128xf32>
    %c0_6 = arith.constant 0 : index
    %c0_7 = arith.constant 0 : index
    %c0_8 = arith.constant 0 : index
    %8 = vector.load %arg4[%c0_6, %c0_7, %c0_8] : memref<1x16x128xi8, #tpu.memory_space<vmem>>, vector<1x16x128xi8>
    %9 = vector.shape_cast %8 : vector<1x16x128xi8> to vector<16x128xi8>
    %10 = arith.sitofp %9 : vector<16x128xi8> to vector<16x128xf32>
    %cst = arith.constant 5.000000e-01 : f32
    %11 = vector.broadcast %cst : f32 to vector<16x128xf32>
    %12 = arith.mulf %11, %4 : vector<16x128xf32>
    %13 = math.tanh %12 : vector<16x128xf32>
    %cst_9 = arith.constant 5.000000e-01 : f32
    %14 = vector.broadcast %cst_9 : f32 to vector<16x128xf32>
    %15 = arith.mulf %14, %13 : vector<16x128xf32>
    %cst_10 = arith.constant 5.000000e-01 : f32
    %16 = vector.broadcast %cst_10 : f32 to vector<16x128xf32>
    %17 = arith.addf %15, %16 : vector<16x128xf32>
    %18 = arith.mulf %17, %10 : vector<16x128xf32>
    %19 = arith.mulf %7, %10 : vector<16x128xf32>
    %20 = arith.fptosi %19 : vector<16x128xf32> to vector<16x128xi32>
    %c1_i32 = arith.constant 1 : i32
    %21 = vector.broadcast %c1_i32 : i32 to vector<16x128xi32>
    %22 = arith.cmpi eq, %20, %21 : vector<16x128xi32>
    %23 = arith.extui %22 : vector<16x128xi1> to vector<16x128xi32>
    %24 = arith.sitofp %23 : vector<16x128xi32> to vector<16x128xf32>
    %25 = arith.mulf %18, %24 : vector<16x128xf32>
    %26 = arith.addf %18, %24 : vector<16x128xf32>
    %27 = arith.subf %26, %25 : vector<16x128xf32>
    %c0_11 = arith.constant 0 : index
    %c0_12 = arith.constant 0 : index
    %c0_13 = arith.constant 0 : index
    %28 = vector.load %arg5[%c0_11, %c0_12, %c0_13] : memref<1x8x128xf32, #tpu.memory_space<vmem>>, vector<1x8x128xf32>
    %29 = vector.shape_cast %28 : vector<1x8x128xf32> to vector<8x128xf32>
    %30 = vector.shape_cast %25 : vector<16x128xf32> to vector<2x8x128xf32>
    %cst_14 = arith.constant dense<0.000000e+00> : vector<8x128xf32>
    %31 = vector.multi_reduction <add>, %30, %cst_14 [0] : vector<2x8x128xf32> to vector<8x128xf32>
    %32 = arith.addf %29, %31 : vector<8x128xf32>
    %c0_15 = arith.constant 0 : index
    %c0_16 = arith.constant 0 : index
    %c0_17 = arith.constant 0 : index
    %33 = vector.load %arg5[%c0_15, %c0_16, %c0_17] : memref<1x8x128xf32, #tpu.memory_space<vmem>>, vector<1x8x128xf32>
    %34 = vector.shape_cast %33 : vector<1x8x128xf32> to vector<8x128xf32>
    %35 = vector.shape_cast %32 : vector<8x128xf32> to vector<1x8x128xf32>
    tpu.vector_store %arg5[%c0_15, %c0_16, %c0_17], %35 {strides = array<i32>} : memref<1x8x128xf32, #tpu.memory_space<vmem>>, vector<1x8x128xf32>,
    %c0_18 = arith.constant 0 : index
    %c0_19 = arith.constant 0 : index
    %c0_20 = arith.constant 0 : index
    %36 = vector.load %arg6[%c0_18, %c0_19, %c0_20] : memref<1x8x128xf32, #tpu.memory_space<vmem>>, vector<1x8x128xf32>
    %37 = vector.shape_cast %36 : vector<1x8x128xf32> to vector<8x128xf32>
    %38 = vector.shape_cast %27 : vector<16x128xf32> to vector<2x8x128xf32>
    %cst_21 = arith.constant dense<0.000000e+00> : vector<8x128xf32>
    %39 = vector.multi_reduction <add>, %38, %cst_21 [0] : vector<2x8x128xf32> to vector<8x128xf32>
    %40 = arith.addf %37, %39 : vector<8x128xf32>
    %c0_22 = arith.constant 0 : index
    %c0_23 = arith.constant 0 : index
    %c0_24 = arith.constant 0 : index
    %41 = vector.load %arg6[%c0_22, %c0_23, %c0_24] : memref<1x8x128xf32, #tpu.memory_space<vmem>>, vector<1x8x128xf32>
    %42 = vector.shape_cast %41 : vector<1x8x128xf32> to vector<8x128xf32>
    %43 = vector.shape_cast %40 : vector<8x128xf32> to vector<1x8x128xf32>
    tpu.vector_store %arg6[%c0_22, %c0_23, %c0_24], %43 {strides = array<i32>} : memref<1x8x128xf32, #tpu.memory_space<vmem>>, vector<1x8x128xf32>,
    return
  }
  func.func @transform_0(%arg0: i32, %arg1: i32) -> (i32, i32, i32) {
    %c0_i32 = arith.constant 0 : i32
    %c0_i32_0 = arith.constant 0 : i32
    return %arg0, %arg1, %c0_i32 : i32, i32, i32
  }
  func.func @transform_1(%arg0: i32, %arg1: i32) -> (i32, i32, i32) {
    %c0_i32 = arith.constant 0 : i32
    %c0_i32_0 = arith.constant 0 : i32
    return %arg0, %arg1, %c0_i32 : i32, i32, i32
  }
  func.func @transform_2(%arg0: i32, %arg1: i32) -> (i32, i32, i32) {
    %c0_i32 = arith.constant 0 : i32
    %c0_i32_0 = arith.constant 0 : i32
    return %arg0, %arg1, %c0_i32 : i32, i32, i32
  }
  func.func @transform_3(%arg0: i32, %arg1: i32) -> (i32, i32, i32) {
    %c0_i32 = arith.constant 0 : i32
    %c0_i32_0 = arith.constant 0 : i32
    %c0_i32_1 = arith.constant 0 : i32
    return %arg0, %c0_i32, %c0_i32_0 : i32, i32, i32
  }
  func.func @transform_4(%arg0: i32, %arg1: i32) -> (i32, i32, i32) {
    %c0_i32 = arith.constant 0 : i32
    %c0_i32_0 = arith.constant 0 : i32
    %c0_i32_1 = arith.constant 0 : i32
    return %arg0, %c0_i32, %c0_i32_0 : i32, i32, i32
  }
}

</mosaic_0001>

<llo_original>
// kernel: tpu_custom_call.1
$region0: #{tpu_custom_call.1}
  #allocation0 [shape = 'u32[]', space=smem, size = 0x4, offset = 0x4, fixed_abs, tag = 'smem constant byte address 0x4 - core index']
  #allocation1 [shape = 'u32[144,128]{1,0:T(1,128)}', space=vmem, size = 0x12000, scoped, tag = 'internal scratch']
  %s0 = inlined_call_operand.hbm [shape: f32[6,16,128], index: 0, kind: input, shape index: {}]
  %s1 = inlined_call_operand.hbm [shape: s8[6,16,128], index: 1, kind: input, shape index: {}]
  %s2 = inlined_call_operand.hbm [shape: s8[6,16,128], index: 2, kind: input, shape index: {}]
  %s3 = inlined_call_operand.hbm [shape: f32[6,8,128], index: 3, kind: output, shape index: {0}]
  %s4 = inlined_call_operand.hbm [shape: f32[6,8,128], index: 4, kind: output, shape index: {1}]
  %5 = xla_tuple %s3, %s4
  %s6 = sld [smem:[#allocation0]]
  $region69: #{tpu_custom_call.1} parent=0
    _
  %s8 = ssub.s32 1, %s6
  %s9 = scalar_select 0, %s8, %s6
  $region1: #{tpu_custom_call.1} parent=0
    #allocation2 [shape = 'u8[16384]{0}', space=vmem, size = 0x4000, scoped, tag = 'input window, operand 0']
    #allocation3 [shape = 's32[2]{0}', space=sflag, size = 0x8, scoped, tag = 'scoped memory for tpu_custom_call.1']
    #allocation4 [shape = 's32[2]{0}', space=sflag, size = 0x8, scoped, tag = 'scoped memory for tpu_custom_call.1']
    #allocation5 [shape = 'u8[4096]{0}', space=vmem, size = 0x1000, scoped, tag = 'input window, operand 1']
    #allocation6 [shape = 's32[2]{0}', space=sflag, size = 0x8, scoped, tag = 'scoped memory for tpu_custom_call.1']
    #allocation7 [shape = 'u8[4096]{0}', space=vmem, size = 0x1000, scoped, tag = 'input window, operand 2']
    #allocation8 [shape = 'u8[8192]{0}', space=vmem, size = 0x2000, scoped, tag = 'output window, operand 0']
    #allocation9 [shape = 'u8[8192]{0}', space=vmem, size = 0x2000, scoped, tag = 'output window, operand 1']
    #allocation10 [shape = 's32[2]{0}', space=sflag, size = 0x8, scoped, tag = 'scoped memory for tpu_custom_call.1']
    %10 = vsyncpa [#allocation3], 0
    %s11 = scalar_lea.sflag [#allocation3], 1
    %12 = vsyncpa %s11, 0
    %13 = vsyncpa [#allocation6], 0
    %s14 = scalar_lea.sflag [#allocation6], 1
    %15 = vsyncpa %s14, 0
    %16 = vsyncpa [#allocation4], 0
    %s17 = scalar_lea.sflag [#allocation4], 1
    %18 = vsyncpa %s17, 0
    %19 = vsyncpa [#allocation10], 0
    %s20 = scalar_lea.sflag [#allocation10], 1
    %21 = vsyncpa %s20, 0
    loop: start=0, step=1, limit=8
    $region2: #{tpu_custom_call.1} parent=1 // loop_pre_header
      _
    $region3: #{tpu_custom_call.1} parent=1 // loop_header
      %s23 = sphi 0, %s27
      %p24 = scmp.ge.s32.totalorder %s23, 8
      %s30 = sphi 0, %s42
      %s31 = sphi 0, %s38
      %s32 = sphi 0, %s30
      %s33 = sphi 0, %s31
      %s34 = sphi 0, %s32
      %s35 = sphi 0, %s33
      %s47 = sphi 0, %s49
      %s50 = sphi 0, %s47
      %s51 = sphi 0, %s50
      %s67 = sphi 0, %s51
      %s75 = sphi 0, %s77
      %s78 = sphi 0, %s75
      %s79 = sphi 0, %s78
      %s95 = sphi 0, %s79
      %s103 = sphi 0, %s105
      %s106 = sphi 0, %s103
      %s107 = sphi 0, %s106
      %s123 = sphi 0, %s107
      %s129 = sphi 0, %s131
      %s132 = sphi 0, %s129
      %s133 = sphi 0, %s132
      %s149 = sphi 0, %s133
      %s155 = sphi 0, %s157
      %s158 = sphi 0, %s155
      %s159 = sphi 0, %s158
      %s175 = sphi 0, %s159
    $region4: #{tpu_custom_call.1} parent=1 // loop_header_branch
      %26 = sbr.rel (%p24) target = $region8
    $region5: #{tpu_custom_call.1} parent=1 // loop_body
      %s28 = ssub.s32 %s23, 1
      %s29 = ssub.s32 %s23, 2
      %s36 = sadd.s32 1, %s31
      %p37 = scmp.ge.s32.totalorder %s36, 1
      %s38 = scalar_select %p37, 0, %s36
      %s39 = sadd.s32 1, %s30
      %s40 = scalar_select %p37, %s39, %s30
      %p41 = scmp.ge.s32.totalorder %s40, 6
      %s42 = scalar_select %p41, 0, %s40
      %s43 = ssub.s32 %s30, %s42
      %s44 = ssub.s32 %s31, %s38
      %s45 = sor.u32 %s43, %s44
      %p46 = scmp.eq.s32.totalorder %s45, 0
      %s48 = sadd.s32 %s47, 1
      %s49 = scalar_select %p46, %s47, %s48
      %p52 = pneg %p46
      %p53 = scmp.eq.s32.totalorder %s23, 5
      %p54 = por %p52, %p53
      %p55 = scmp.ne.s32.totalorder %s47, %s50
      %p56 = scmp.eq.s32.totalorder %s23, 0
      %p57 = por %p55, %p56
      %p58 = scmp.ne.s32.totalorder %s47, %s50
      %p59 = scmp.eq.s32.totalorder %s28, 5
      %p60 = por %p58, %p59
      %p61 = scmp.ne.s32.totalorder %s50, %s51
      %p62 = scmp.eq.s32.totalorder %s28, 0
      %p63 = por %p61, %p62
      %p64 = scmp.ne.s32.totalorder %s50, %s51
      %p65 = scmp.eq.s32.totalorder %s29, 5
      %p66 = por %p64, %p65
      %p68 = scmp.ne.s32.totalorder %s51, %s67
      %p69 = scmp.eq.s32.totalorder %s29, 0
      %p70 = por %p68, %p69
      %s71 = ssub.s32 %s30, %s42
      %s72 = ssub.s32 %s31, %s38
      %s73 = sor.u32 %s71, %s72
      %p74 = scmp.eq.s32.totalorder %s73, 0
      %s76 = sadd.s32 %s75, 1
      %s77 = scalar_select %p74, %s75, %s76
      %p80 = pneg %p74
      %p81 = scmp.eq.s32.totalorder %s23, 5
      %p82 = por %p80, %p81
      %p83 = scmp.ne.s32.totalorder %s75, %s78
      %p84 = scmp.eq.s32.totalorder %s23, 0
      %p85 = por %p83, %p84
      %p86 = scmp.ne.s32.totalorder %s75, %s78
      %p87 = scmp.eq.s32.totalorder %s28, 5
      %p88 = por %p86, %p87
      %p89 = scmp.ne.s32.totalorder %s78, %s79
      %p90 = scmp.eq.s32.totalorder %s28, 0
      %p91 = por %p89, %p90
      %p92 = scmp.ne.s32.totalorder %s78, %s79
      %p93 = scmp.eq.s32.totalorder %s29, 5
      %p94 = por %p92, %p93
      %p96 = scmp.ne.s32.totalorder %s79, %s95
      %p97 = scmp.eq.s32.totalorder %s29, 0
      %p98 = por %p96, %p97
      %s99 = ssub.s32 %s30, %s42
      %s100 = ssub.s32 %s31, %s38
      %s101 = sor.u32 %s99, %s100
      %p102 = scmp.eq.s32.totalorder %s101, 0
      %s104 = sadd.s32 %s103, 1
      %s105 = scalar_select %p102, %s103, %s104
      %p108 = pneg %p102
      %p109 = scmp.eq.s32.totalorder %s23, 5
      %p110 = por %p108, %p109
      %p111 = scmp.ne.s32.totalorder %s103, %s106
      %p112 = scmp.eq.s32.totalorder %s23, 0
      %p113 = por %p111, %p112
      %p114 = scmp.ne.s32.totalorder %s103, %s106
      %p115 = scmp.eq.s32.totalorder %s28, 5
      %p116 = por %p114, %p115
      %p117 = scmp.ne.s32.totalorder %s106, %s107
      %p118 = scmp.eq.s32.totalorder %s28, 0
      %p119 = por %p117, %p118
      %p120 = scmp.ne.s32.totalorder %s106, %s107
      %p121 = scmp.eq.s32.totalorder %s29, 5
      %p122 = por %p120, %p121
      %p124 = scmp.ne.s32.totalorder %s107, %s123
      %p125 = scmp.eq.s32.totalorder %s29, 0
      %p126 = por %p124, %p125
      %s127 = ssub.s32 %s30, %s42
      %p128 = scmp.eq.s32.totalorder %s127, 0
      %s130 = sadd.s32 %s129, 1
      %s131 = scalar_select %p128, %s129, %s130
      %p134 = pneg %p128
      %p135 = scmp.eq.s32.totalorder %s23, 5
      %p136 = por %p134, %p135
      %p137 = scmp.ne.s32.totalorder %s129, %s132
      %p138 = scmp.eq.s32.totalorder %s23, 0
      %p139 = por %p137, %p138
      %p140 = scmp.ne.s32.totalorder %s129, %s132
      %p141 = scmp.eq.s32.totalorder %s28, 5
      %p142 = por %p140, %p141
      %p143 = scmp.ne.s32.totalorder %s132, %s133
      %p144 = scmp.eq.s32.totalorder %s28, 0
      %p145 = por %p143, %p144
      %p146 = scmp.ne.s32.totalorder %s132, %s133
      %p147 = scmp.eq.s32.totalorder %s29, 5
      %p148 = por %p146, %p147
      %p150 = scmp.ne.s32.totalorder %s133, %s149
      %p151 = scmp.eq.s32.totalorder %s29, 0
      %p152 = por %p150, %p151
      %s153 = ssub.s32 %s30, %s42
      %p154 = scmp.eq.s32.totalorder %s153, 0
      %s156 = sadd.s32 %s155, 1
      %s157 = scalar_select %p154, %s155, %s156
      %p160 = pneg %p154
      %p161 = scmp.eq.s32.totalorder %s23, 5
      %p162 = por %p160, %p161
      %p163 = scmp.ne.s32.totalorder %s155, %s158
      %p164 = scmp.eq.s32.totalorder %s23, 0
      %p165 = por %p163, %p164
      %p166 = scmp.ne.s32.totalorder %s155, %s158
      %p167 = scmp.eq.s32.totalorder %s28, 5
      %p168 = por %p166, %p167
      %p169 = scmp.ne.s32.totalorder %s158, %s159
      %p170 = scmp.eq.s32.totalorder %s28, 0
      %p171 = por %p169, %p170
      %p172 = scmp.ne.s32.totalorder %s158, %s159
      %p173 = scmp.eq.s32.totalorder %s29, 5
      %p174 = por %p172, %p173
      %p176 = scmp.ne.s32.totalorder %s159, %s175
      %p177 = scmp.eq.s32.totalorder %s29, 0
      %p178 = por %p176, %p177
      %p179 = scmp.le.s32.totalorder 1, %s23
      %p180 = scmp.lt.s32.totalorder %s23, 7
      %p181 = pnand %p179, %p180
      %p182 = pneg %p181
      // Predicated region
      $region9: #{tpu_custom_call.1} parent=5 // pred_check
        _
      $region10: #{tpu_custom_call.1} parent=5 // pred_check_branch
        %184 = sbr.rel (%p181) target = $region12
      $region11: #{tpu_custom_call.1} parent=5 // pred_region
        %s185 = ssub.s32 %s23, 1
      $region12: #{tpu_custom_call.1} parent=5 // pred_fallthru
        _
      %p186 = scmp.lt.s32.totalorder %s23, 6
      // Predicated region
      $region13: #{tpu_custom_call.1} parent=5 // pred_check
        %p187 = pneg %p186
      $region14: #{tpu_custom_call.1} parent=5 // pred_check_branch
        %189 = sbr.rel (%p187) target = $region16
      $region15: #{tpu_custom_call.1} parent=5 // pred_region
        // Predicated region
        $region17: #{tpu_custom_call.1} parent=15 // pred_check
          %p190 = pneg %p57
        $region18: #{tpu_custom_call.1} parent=15 // pred_check_branch
          %192 = sbr.rel (%p190) target = $region20
        $region19: #{tpu_custom_call.1} parent=15 // pred_region
          %s193 = sand.u32 %s47, 1
          %s194 = scalar_lea.sflag [#allocation3], %s193
          %s195 = sand.u32 %s47, 1
          %s196 = smul.addr %s195, 16
          %s197 = scalar_lea.vmem [#allocation2], %s196
          %s198 = smul.u32 2, %s31
          %s200 = ssub.s32 256, 256
          %201 = vsyncadd %s194, %s200
          %s202 = smul.addr %s30, 2
          %s203 = sadd.s32 %s198, %s202
          %s204 = smul.addr %s203, 128
          %s205 = scalar_lea.hbm %s0, %s204
          %s206 = sshll.u32 %s197, 4
          %s207 = int_to_ptr.vmem [resolvable:$true] %s206
          %212 = dma.hbm_to_vmem [thread:$0]  %s205, 256, %s207, %s194, 128, 128, 8
        $region20: #{tpu_custom_call.1} parent=15 // pred_fallthru
          _
        // Predicated region
        $region21: #{tpu_custom_call.1} parent=15 // pred_check
          %p213 = pneg %p85
        $region22: #{tpu_custom_call.1} parent=15 // pred_check_branch
          %215 = sbr.rel (%p213) target = $region24
        $region23: #{tpu_custom_call.1} parent=15 // pred_region
          %s216 = sand.u32 %s23, 1
          %s217 = scalar_lea.sflag [#allocation6], %s216
          %s218 = sand.u32 %s75, 1
          %s219 = smul.addr %s218, 4
          %s220 = scalar_lea.vmem [#allocation5], %s219
          %s221 = smul.u32 2, %s31
          %s223 = ssub.s32 64, 64
          %224 = vsyncadd %s217, %s223
          %s225 = smul.addr %s30, 2
          %s226 = sadd.s32 %s221, %s225
          %s227 = smul.addr %s226, 32
          %s228 = scalar_lea.hbm %s1, %s227
          %s229 = sshll.u32 %s220, 4
          %s230 = int_to_ptr.vmem [resolvable:$true] %s229
          %235 = dma.hbm_to_vmem [thread:$0]  %s228, 64, %s230, %s217, 32, 32, 2
        $region24: #{tpu_custom_call.1} parent=15 // pred_fallthru
          _
        // Predicated region
        $region25: #{tpu_custom_call.1} parent=15 // pred_check
          %p236 = pneg %p113
        $region26: #{tpu_custom_call.1} parent=15 // pred_check_branch
          %238 = sbr.rel (%p236) target = $region28
        $region27: #{tpu_custom_call.1} parent=15 // pred_region
          %s239 = sand.u32 %s23, 1
          %s240 = scalar_lea.sflag [#allocation6], %s239
          %s241 = sand.u32 %s103, 1
          %s242 = smul.addr %s241, 4
          %s243 = scalar_lea.vmem [#allocation7], %s242
          %s244 = smul.u32 2, %s31
          %s246 = ssub.s32 64, 64
          %247 = vsyncadd %s240, %s246
          %s248 = smul.addr %s30, 2
          %s249 = sadd.s32 %s244, %s248
          %s250 = smul.addr %s249, 32
          %s251 = scalar_lea.hbm %s2, %s250
          %s252 = sshll.u32 %s243, 4
          %s253 = int_to_ptr.vmem [resolvable:$true] %s252
          %258 = dma.hbm_to_vmem [thread:$0]  %s251, 64, %s253, %s240, 32, 32, 2
        $region28: #{tpu_custom_call.1} parent=15 // pred_fallthru
          _
      $region16: #{tpu_custom_call.1} parent=5 // pred_fallthru
        _
      %p259 = scmp.le.s32.totalorder 1, %s23
      %p260 = scmp.lt.s32.totalorder %s23, 7
      %p261 = pnand %p259, %p260
      %p262 = pneg %p261
      // Predicated region
      $region29: #{tpu_custom_call.1} parent=5 // pred_check
        _
      $region30: #{tpu_custom_call.1} parent=5 // pred_check_branch
        %264 = sbr.rel (%p261) target = $region32
      $region31: #{tpu_custom_call.1} parent=5 // pred_region
        %s265 = ssub.s32 %s23, 1
        %s266 = sand.u32 %s50, 1
        %s267 = scalar_lea.sflag [#allocation3], %s266
        %s268 = sand.u32 %s50, 1
        %s269 = smul.addr %s268, 16
        %s270 = scalar_lea.vmem [#allocation2], %s269
        // Predicated region
        $region33: #{tpu_custom_call.1} parent=31 // pred_check
          %p271 = pneg %p63
        $region34: #{tpu_custom_call.1} parent=31 // pred_check_branch
          %273 = sbr.rel (%p271) target = $region36
        $region35: #{tpu_custom_call.1} parent=31 // pred_region
          %274 = dma.done %s267, 256
        $region36: #{tpu_custom_call.1} parent=31 // pred_fallthru
          _
        %s275 = sand.u32 %s28, 1
        %s276 = scalar_lea.sflag [#allocation6], %s275
        %s277 = sand.u32 %s78, 1
        %s278 = smul.addr %s277, 4
        %s279 = scalar_lea.vmem [#allocation5], %s278
        // Predicated region
        $region37: #{tpu_custom_call.1} parent=31 // pred_check
          %p280 = pneg %p91
        $region38: #{tpu_custom_call.1} parent=31 // pred_check_branch
          %282 = sbr.rel (%p280) target = $region40
        $region39: #{tpu_custom_call.1} parent=31 // pred_region
          %283 = dma.done %s276, 64
        $region40: #{tpu_custom_call.1} parent=31 // pred_fallthru
          _
        %s284 = sand.u32 %s28, 1
        %s285 = scalar_lea.sflag [#allocation6], %s284
        %s286 = sand.u32 %s106, 1
        %s287 = smul.addr %s286, 4
        %s288 = scalar_lea.vmem [#allocation7], %s287
        // Predicated region
        $region41: #{tpu_custom_call.1} parent=31 // pred_check
          %p289 = pneg %p119
        $region42: #{tpu_custom_call.1} parent=31 // pred_check_branch
          %291 = sbr.rel (%p289) target = $region44
        $region43: #{tpu_custom_call.1} parent=31 // pred_region
          %292 = dma.done %s285, 64
        $region44: #{tpu_custom_call.1} parent=31 // pred_fallthru
          _
        %s293 = sand.u32 %s50, 1
        %s294 = scalar_lea.sflag [#allocation3], %s293
        %s295 = sand.u32 %s50, 1
        %s296 = smul.addr %s295, 16
        %s297 = scalar_lea.vmem [#allocation2], %s296
        %p298 = pneg %p63
        %p299 = pneg %p60
        %s300 = sand.u32 %s28, 1
        %s301 = scalar_lea.sflag [#allocation6], %s300
        %s302 = sand.u32 %s78, 1
        %s303 = smul.addr %s302, 4
        %s304 = scalar_lea.vmem [#allocation5], %s303
        %p305 = pneg %p91
        %p306 = pneg %p88
        %s307 = sand.u32 %s28, 1
        %s308 = scalar_lea.sflag [#allocation6], %s307
        %s309 = sand.u32 %s106, 1
        %s310 = smul.addr %s309, 4
        %s311 = scalar_lea.vmem [#allocation7], %s310
        %p312 = pneg %p119
        %p313 = pneg %p116
        %p314 = pneg %p145
        %p315 = pneg %p142
        %s316 = sand.u32 %s132, 1
        %s317 = scalar_lea.sflag [#allocation4], %s316
        %s318 = sand.u32 %s132, 1
        %s319 = smul.addr %s318, 8
        %s320 = scalar_lea.vmem [#allocation8], %s319
        %p321 = pneg %p171
        %p322 = pneg %p168
        %s323 = sand.u32 %s158, 1
        %s324 = scalar_lea.sflag [#allocation10], %s323
        %s325 = sand.u32 %s158, 1
        %s326 = smul.addr %s325, 8
        %s327 = scalar_lea.vmem [#allocation9], %s326
        %s328 = smul.u32 2, %s33
        %s329 = smul.u32 2, %s33
        %s330 = smul.u32 2, %s33
        %p331 = scmp.eq.s32.totalorder %s33, 0
        // Predicated region
        $region45: #{tpu_custom_call.1} parent=31 // pred_check
          %p332 = pneg %p331
        $region46: #{tpu_custom_call.1} parent=31 // pred_check_branch
          %334 = sbr.rel (%p332) target = $region48
        $region47: #{tpu_custom_call.1} parent=31 // pred_region
          %335 = vst [vmem:[%s320] sm:$0xff] 0.0
          %336 = vst [vmem:[%s327] sm:$0xff] 0.0
        $region48: #{tpu_custom_call.1} parent=31 // pred_fallthru
          _
        %v337 = vld [vmem:[%s270] sm:$0xff]
        %v338 = vld [vmem:[%s270 + $0x8] sm:$0xff]
        %v339 = vld [vmem:[%s279] sm:$0x3]
        %v340 = vld [vmem:[%s279 + $0x2] sm:$0x3]
        %v341 = vunpack.c.0.s8 %v339
        %v342 = vunpack.c.0.s8 %v340
        %v343 = vcvt.s32.f32 %v341
        %v344 = vcvt.s32.f32 %v342
        %v345 = vld [vmem:[%s288] sm:$0x3]
        %v346 = vld [vmem:[%s288 + $0x2] sm:$0x3]
        %v347 = vunpack.c.0.s8 %v345
        %v348 = vunpack.c.0.s8 %v346
        %v349 = vcvt.s32.f32 %v347
        %v350 = vcvt.s32.f32 %v348
        %v351 = vmul.f32 %v337, 0.5
        %v352 = vmul.f32 %v338, 0.5
        %v353 = vtanh.pop %v351
        %v354 = vtanh.pop %v352
        %v355 = vmul.f32 %v353, 0.5
        %v356 = vmul.f32 %v354, 0.5
        %v357 = vadd.f32 %v355, 0.5
        %v358 = vadd.f32 %v356, 0.5
        %v359 = vmul.f32 %v357, %v349
        %v360 = vmul.f32 %v358, %v350
        %v361 = vmul.f32 %v343, %v349
        %v362 = vmul.f32 %v344, %v350
        %v363 = vcvt.f32.s32.to.zero.pseudo %v361
        %v364 = vcvt.f32.s32.to.zero.pseudo %v362
        %vm365 = vcmp.eq.s32.totalorder %v363, 1
        %vm366 = vcmp.eq.s32.totalorder %v364, 1
        %v367 = vsel %vm365, 1, 0
        %v368 = vsel %vm366, 1, 0
        %v369 = vcvt.s32.f32 %v367
        %v370 = vcvt.s32.f32 %v368
        %v371 = vmul.f32 %v359, %v369
        %v372 = vmul.f32 %v360, %v370
        %v373 = vadd.f32 %v359, %v369
        %v374 = vadd.f32 %v360, %v370
        %v375 = vsub.f32 %v373, %v371
        %v376 = vsub.f32 %v374, %v372
        %v377 = vld [vmem:[%s320] sm:$0xff]
        %v378 = vadd.f32 %v371, %v372
        %v379 = vadd.f32 %v377, %v378
        %380 = vst [vmem:[%s320] sm:$0xff] %v379
        %v381 = vld [vmem:[%s327] sm:$0xff]
        %v382 = vadd.f32 %v375, %v376
        %v383 = vadd.f32 %v381, %v382
        %384 = vst [vmem:[%s327] sm:$0xff] %v383
        %s385 = sand.u32 %s132, 1
        %s386 = scalar_lea.sflag [#allocation4], %s385
        %s387 = sand.u32 %s132, 1
        %s388 = smul.addr %s387, 8
        %s389 = scalar_lea.vmem [#allocation8], %s388
        %s390 = sand.u32 %s158, 1
        %s391 = scalar_lea.sflag [#allocation10], %s390
        %s392 = sand.u32 %s158, 1
        %s393 = smul.addr %s392, 8
        %s394 = scalar_lea.vmem [#allocation9], %s393
        // Predicated region
        $region49: #{tpu_custom_call.1} parent=31 // pred_check
          %p395 = pneg %p142
        $region50: #{tpu_custom_call.1} parent=31 // pred_check_branch
          %397 = sbr.rel (%p395) target = $region52
        $region51: #{tpu_custom_call.1} parent=31 // pred_region
          %s399 = ssub.s32 128, 128
          %400 = vsyncadd %s386, %s399
          %s401 = smul.addr %s32, 128
          %s402 = scalar_lea.hbm %s3, %s401
          %s404 = sshll.u32 %s389, 4
          %s405 = int_to_ptr.vmem [resolvable:$true] %s404
          %407 = dma.vmem_to_hbm [thread:$0]  %s405, 128, %s402, %s386
        $region52: #{tpu_custom_call.1} parent=31 // pred_fallthru
          _
        // Predicated region
        $region53: #{tpu_custom_call.1} parent=31 // pred_check
          %p408 = pneg %p168
        $region54: #{tpu_custom_call.1} parent=31 // pred_check_branch
          %410 = sbr.rel (%p408) target = $region56
        $region55: #{tpu_custom_call.1} parent=31 // pred_region
          %s412 = ssub.s32 128, 128
          %413 = vsyncadd %s391, %s412
          %s414 = smul.addr %s32, 128
          %s415 = scalar_lea.hbm %s4, %s414
          %s417 = sshll.u32 %s394, 4
          %s418 = int_to_ptr.vmem [resolvable:$true] %s417
          %420 = dma.vmem_to_hbm [thread:$0]  %s418, 128, %s415, %s391
        $region56: #{tpu_custom_call.1} parent=31 // pred_fallthru
          _
      $region32: #{tpu_custom_call.1} parent=5 // pred_fallthru
        _
      %p421 = scmp.le.s32.totalorder 2, %s23
      // Predicated region
      $region57: #{tpu_custom_call.1} parent=5 // pred_check
        %p422 = pneg %p421
      $region58: #{tpu_custom_call.1} parent=5 // pred_check_branch
        %424 = sbr.rel (%p422) target = $region60
      $region59: #{tpu_custom_call.1} parent=5 // pred_region
        %s425 = ssub.s32 %s23, 2
        // Predicated region
        $region61: #{tpu_custom_call.1} parent=59 // pred_check
          %p426 = pneg %p148
        $region62: #{tpu_custom_call.1} parent=59 // pred_check_branch
          %428 = sbr.rel (%p426) target = $region64
        $region63: #{tpu_custom_call.1} parent=59 // pred_region
          %s429 = sand.u32 %s133, 1
          %s430 = scalar_lea.sflag [#allocation4], %s429
          %s431 = sand.u32 %s133, 1
          %s432 = smul.addr %s431, 8
          %s433 = scalar_lea.vmem [#allocation8], %s432
          %434 = dma.done %s430, 128
        $region64: #{tpu_custom_call.1} parent=59 // pred_fallthru
          _
        // Predicated region
        $region65: #{tpu_custom_call.1} parent=59 // pred_check
          %p435 = pneg %p174
        $region66: #{tpu_custom_call.1} parent=59 // pred_check_branch
          %437 = sbr.rel (%p435) target = $region68
        $region67: #{tpu_custom_call.1} parent=59 // pred_region
          %s438 = sand.u32 %s159, 1
          %s439 = scalar_lea.sflag [#allocation10], %s438
          %s440 = sand.u32 %s159, 1
          %s441 = smul.addr %s440, 8
          %s442 = scalar_lea.vmem [#allocation9], %s441
          %443 = dma.done %s439, 128
        $region68: #{tpu_custom_call.1} parent=59 // pred_fallthru
          _
      $region60: #{tpu_custom_call.1} parent=5 // pred_fallthru
        _
    $region6: #{tpu_custom_call.1} parent=1 // loop_footer
      %s27 = sadd.s32 1, %s23
    $region7: #{tpu_custom_call.1} parent=1 // loop_footer_branch
      %22 = sbr.rel target = $region3
    $region8: #{tpu_custom_call.1} parent=1 // loop_exit
      _
    %444 = vsyncpa [#allocation3], 1
    %s445 = scalar_lea.sflag [#allocation3], 1
    %446 = vsyncpa %s445, 1
    %447 = vsyncpa [#allocation6], 1
    %s448 = scalar_lea.sflag [#allocation6], 1
    %449 = vsyncpa %s448, 1
    %450 = vsyncpa [#allocation4], 1
    %s451 = scalar_lea.sflag [#allocation4], 1
    %452 = vsyncpa %s451, 1
    %453 = vsyncpa [#allocation10], 1
    %s454 = scalar_lea.sflag [#allocation10], 1
    %455 = vsyncpa %s454, 1

</llo_original>
